<compile_context>
chip_gen: v7x
topology: tpu7x:2x2x1
jax: 0.10.0
libtpu: 0.0.40
codegen_flags: <defaults>
</compile_context>

<pallas_src>
import jax
import jax.numpy as jnp
from jax.experimental import pallas as pl
from jax.experimental.pallas import tpu as pltpu

# -----------------------------------------------------------------------------
# Problem sizes (small, consistent with the module's forward; last dims 128)
# -----------------------------------------------------------------------------
B = 2            # batch size
C = 3            # image channels
H = W = 16       # spatial
N_CLS = 4        # number of classes
N_CTX = 4        # number of context tokens
CTX_DIM = 128    # token embedding width (ln_final width) — lane-dense
SEQ = 16         # total prompt length (1 prefix + N_CTX ctx + N_SUF suffix)
N_SUF = SEQ - 1 - N_CTX
DIM = 128        # text_projection output dim (joint embedding dim) — lane-dense
IMG_FLAT = C * H * W   # 768 = 6 * 128, lane-dense

_VMEM = pl.BlockSpec(memory_space=pltpu.MemorySpace.VMEM)
_SMEM = pl.BlockSpec(memory_space=pltpu.MemorySpace.SMEM)

_EPS = 1e-12


# -----------------------------------------------------------------------------
# Kernel 1: text features (params-only; compute once, cache across images)
#   mean-pool [prefix | ctx | suffix] over seq  ->  @ w_text  ->  L2 normalize
# -----------------------------------------------------------------------------
def _text_features_kernel(prefsuf_ref, ctx_ref, w_text_ref, o_ref):
    # prefsuf_ref = token_prefix + token_suffix.sum(seq), precomputed outside.
    ctx_sum = jnp.sum(ctx_ref[...], axis=0, keepdims=True)          # (1, CTX_DIM)
    pooled = (prefsuf_ref[...] + ctx_sum) * (1.0 / SEQ)             # (N_CLS, CTX_DIM) f32

    # MXU in bf16, accumulate in f32.
    txt = jnp.dot(pooled.astype(w_text_ref.dtype), w_text_ref[...],
                  preferred_element_type=jnp.float32)               # (N_CLS, DIM)

    # L2 normalize (reference divides by .norm(); eps guard only changes
    # exact-zero rows, which stay finite here).
    inv = jax.lax.rsqrt(
        jnp.maximum(jnp.sum(txt * txt, axis=-1, keepdims=True), _EPS))
    o_ref[...] = txt * inv


def compute_text_features(params):
    # Image-independent: both operands are parameters/buffers, so fold the
    # prefix + suffix.sum(seq) outside the kernel (drops the padded 3-D
    # (N_CLS, N_SUF, CTX_DIM) operand and its XLU reduction from the kernel).
    prefsuf = (params["token_prefix"].reshape(N_CLS, CTX_DIM)
               + jnp.sum(params["token_suffix"], axis=1))            # (N_CLS, CTX_DIM)
    return pl.pallas_call(
        _text_features_kernel,
        out_shape=jax.ShapeDtypeStruct((N_CLS, DIM), jnp.float32),
        in_specs=[_VMEM, _VMEM, _VMEM],
        out_specs=_VMEM,
    )(prefsuf, params["ctx"], params["w_text"])


# -----------------------------------------------------------------------------
# Kernel 2: per-image path
#   visual-prompt add  ->  image proj  ->  L2 normalize  ->  * exp(logit_scale)
#   ->  logits = img_feat @ txt.T
# -----------------------------------------------------------------------------
def _image_logits_kernel(scale_ref, pw_ref,          # SMEM scalars
                         img_ref, vp_ref, w_img_ref, # image inputs (w_img bf16)
                         txt_ref,                    # cached text features (f32)
                         o_ref):                     # logits out
    pw = pw_ref[0, 0]                                               # runtime scalar
    img = img_ref[...] + vp_ref[...] * pw                           # (B, C*H*W) f32

    img_feat = jnp.dot(img.astype(w_img_ref.dtype), w_img_ref[...],
                       preferred_element_type=jnp.float32)          # (B, DIM)

    inv = jax.lax.rsqrt(
        jnp.maximum(jnp.sum(img_feat * img_feat, axis=-1, keepdims=True), _EPS))

    # NOTE: real CLIP usually clamps exp(logit_scale) <= 100; the reference
    # module applies exp unclamped, so we match that.  Fold the scale into the
    # (B, DIM) image features so the final dot's result stores directly.
    scale = jnp.exp(scale_ref[0, 0])
    img_feat = img_feat * (inv * scale)

    # logits = scale * img_feat_norm @ txt_norm.T
    o_ref[...] = jax.lax.dot_general(
        img_feat, txt_ref[...], (((1,), (1,)), ((), ())),
        preferred_element_type=jnp.float32)                         # (B, N_CLS)


def clip_plus_plus_forward(params, image, use_vp=True, prompt_weight=0.1,
                           text_features=None):
    b, c, h, w = image.shape
    img_flat = image.reshape(b, c * h * w)                          # lane-dense (B, 768)
    vp_flat = params["visual_prompt"].reshape(b, c * h * w)

    # Text features depend only on params: compute once here if not cached.
    if text_features is None:
        text_features = compute_text_features(params)

    # Traced runtime scalar: use_vp=False == prompt weight 0 (image unchanged).
    # Passing jnp scalars keeps "no recompilation when prompt_weight changes"
    # true under jax.jit.
    pw = (jnp.asarray(prompt_weight, jnp.float32)
          * jnp.asarray(use_vp, jnp.float32)).reshape(1, 1)

    return pl.pallas_call(
        _image_logits_kernel,
        out_shape=jax.ShapeDtypeStruct((b, N_CLS), jnp.float32),
        in_specs=[_SMEM, _SMEM,            # logit_scale, prompt_weight
                  _VMEM, _VMEM, _VMEM,     # img_flat, vp_flat, w_img (bf16)
                  _VMEM],                  # text_features
        out_specs=_VMEM,
    )(params["logit_scale"], pw,
      img_flat, vp_flat, params["w_img"],
      text_features)


def init_params(key):
    ks = jax.random.split(key, 7)
    params = {
        # PromptLearner parameters / buffers
        "ctx": 0.02 * jax.random.normal(ks[0], (N_CTX, CTX_DIM), jnp.float32),
        "token_prefix": 0.02 * jax.random.normal(ks[1], (N_CLS, 1, CTX_DIM),
                                                 jnp.float32),
        "token_suffix": 0.02 * jax.random.normal(ks[2], (N_CLS, N_SUF, CTX_DIM),
                                                 jnp.float32),
        # visual prompt (create_visual_prompt), same spatial shape as image
        "visual_prompt": 0.02 * jax.random.normal(ks[3], (B, C, H, W),
                                                  jnp.float32),
        # encoder stand-in weights — stored bf16: halves the dominant HBM->VMEM
        # DMA and the MXU takes bf16 natively on v5e/v6e/v7x.
        "w_img": (0.02 * jax.random.normal(ks[4], (IMG_FLAT, DIM),
                                           jnp.float32)).astype(jnp.bfloat16),
        "w_text": (0.02 * jax.random.normal(ks[5], (CTX_DIM, DIM),
                                            jnp.float32)).astype(jnp.bfloat16),
        # CLIP logit scale: ln(1/0.07)
        "logit_scale": jnp.full((1, 1), jnp.log(1.0 / 0.07), jnp.float32),
    }
    return params, ks[6]


if __name__ == "__main__":
    key = jax.random.PRNGKey(0)
    params, img_key = init_params(key)
    image = jax.random.normal(img_key, (B, C, H, W), jnp.float32)

    # First call: text features computed inside the forward.
    logits = clip_plus_plus_forward(params, image, use_vp=True,
                                    prompt_weight=0.1)
    logits = jax.block_until_ready(logits)
    assert logits.shape == (B, N_CLS), logits.shape
    assert bool(jnp.all(jnp.isfinite(logits)))

    # Repeated inference: cache the image-independent text features.
    txt_feat = jax.block_until_ready(compute_text_features(params))
    logits_cached = clip_plus_plus_forward(params, image, use_vp=True,
                                           prompt_weight=0.1,
                                           text_features=txt_feat)
    logits_cached = jax.block_until_ready(logits_cached)
    assert logits_cached.shape == (B, N_CLS)
    assert bool(jnp.allclose(logits, logits_cached, rtol=1e-5, atol=1e-5))

    # use_vp / prompt_weight are traced scalars -> different values, same code.
    logits_no_vp = jax.block_until_ready(
        clip_plus_plus_forward(params, image, use_vp=False, prompt_weight=0.5,
                               text_features=txt_feat))
    assert bool(jnp.all(jnp.isfinite(logits_no_vp)))

    print("KERNEL_OK")
</pallas_src>

<mosaic_0001>
module attributes {stable_mosaic.version = 11 : i64} {
  func.func @_text_features_kernel(%arg0: memref<4x128xf32, #tpu.memory_space<vmem>>, %arg1: memref<4x128xf32, #tpu.memory_space<vmem>>, %arg2: memref<128x128xbf16, #tpu.memory_space<vmem>>, %arg3: memref<4x128xf32, #tpu.memory_space<vmem>>) attributes {dimension_semantics = [], scalar_prefetch = 0 : i64, scratch_operands = 0 : i64, tpu.core_type = #tpu.core_type<tc>} {
    %c0 = arith.constant 0 : index
    %c0_0 = arith.constant 0 : index
    %0 = vector.load %arg1[%c0, %c0_0] : memref<4x128xf32, #tpu.memory_space<vmem>>, vector<4x128xf32>
    %cst = arith.constant dense<0.000000e+00> : vector<128xf32>
    %1 = vector.multi_reduction <add>, %0, %cst [0] : vector<4x128xf32> to vector<128xf32>
    %2 = vector.shape_cast %1 : vector<128xf32> to vector<1x128xf32>
    %c0_1 = arith.constant 0 : index
    %c0_2 = arith.constant 0 : index
    %3 = vector.load %arg0[%c0_1, %c0_2] : memref<4x128xf32, #tpu.memory_space<vmem>>, vector<4x128xf32>
    %4 = vector.broadcast %2 : vector<1x128xf32> to vector<4x128xf32>
    %5 = arith.addf %3, %4 : vector<4x128xf32>
    %cst_3 = arith.constant 6.250000e-02 : f32
    %6 = vector.broadcast %cst_3 : f32 to vector<4x128xf32>
    %7 = arith.mulf %5, %6 : vector<4x128xf32>
    %8 = arith.truncf %7 : vector<4x128xf32> to vector<4x128xbf16>
    %c0_4 = arith.constant 0 : index
    %c0_5 = arith.constant 0 : index
    %9 = vector.load %arg2[%c0_4, %c0_5] : memref<128x128xbf16, #tpu.memory_space<vmem>>, vector<128x128xbf16>
    %cst_6 = arith.constant dense<0.000000e+00> : vector<4x128xf32>
    %10 = tpu.matmul %8, %9, %cst_6 {dimension_numbers = #tpu.dot_dimension_numbers<[1], [0], [0], [1], [0, 0, 1, 1], [], []>} : vector<4x128xbf16>, vector<128x128xbf16>, vector<4x128xf32> -> vector<4x128xf32>
    %11 = arith.mulf %10, %10 : vector<4x128xf32>
    %cst_7 = arith.constant dense<0.000000e+00> : vector<4xf32>
    %12 = vector.multi_reduction <add>, %11, %cst_7 [1] : vector<4x128xf32> to vector<4xf32>
    %13 = vector.shape_cast %12 : vector<4xf32> to vector<4x1xf32>
    %cst_8 = arith.constant 9.99999996E-13 : f32
    %14 = vector.broadcast %cst_8 : f32 to vector<4x1xf32>
    %15 = arith.maximumf %13, %14 : vector<4x1xf32>
    %16 = math.rsqrt %15 : vector<4x1xf32>
    %17 = vector.broadcast %16 : vector<4x1xf32> to vector<4x128xf32>
    %18 = arith.mulf %10, %17 : vector<4x128xf32>
    %c0_9 = arith.constant 0 : index
    %c0_10 = arith.constant 0 : index
    %19 = vector.load %arg3[%c0_9, %c0_10] : memref<4x128xf32, #tpu.memory_space<vmem>>, vector<4x128xf32>
    tpu.vector_store %arg3[%c0_9, %c0_10], %18 {strides = array<i32>} : memref<4x128xf32, #tpu.memory_space<vmem>>, vector<4x128xf32>,
    return
  }
}

</mosaic_0001>

<llo_original>
// kernel: tpu_custom_call.1
$region0: #{tpu_custom_call.1}
  #allocation0 [shape = 'u32[]', space=smem, size = 0x4, offset = 0x4, fixed_abs, tag = 'smem constant byte address 0x4 - core index']
  #allocation1 [shape = 'u32[144,128]{1,0:T(1,128)}', space=vmem, size = 0x12000, scoped, tag = 'internal scratch']
  %s0 = inlined_call_operand.hbm [shape: f32[4,128], index: 0, kind: input, shape index: {}]
  %s1 = inlined_call_operand.hbm [shape: f32[4,128], index: 1, kind: input, shape index: {}]
  %s2 = inlined_call_operand.hbm [shape: bf16[128,128], index: 2, kind: input, shape index: {}]
  %s3 = inlined_call_operand.hbm [shape: f32[4,128], index: 3, kind: output, shape index: {}]
  %s4 = sld [smem:[#allocation0]]
  $region34: #{tpu_custom_call.1} parent=0
    _
  %s6 = ssub.s32 1, %s4
  %s7 = scalar_select 0, %s6, %s4
  $region1: #{tpu_custom_call.1} parent=0
    #allocation2 [shape = 'u8[2048]{0}', space=vmem, size = 0x800, scoped, tag = 'input window, operand 0, single buffered']
    #allocation3 [shape = 's32[1]{0}', space=sflag, size = 0x4, scoped, tag = 'scoped memory for tpu_custom_call.1']
    #allocation4 [shape = 's32[1]{0}', space=sflag, size = 0x4, scoped, tag = 'scoped memory for tpu_custom_call.1']
    #allocation5 [shape = 'u8[2048]{0}', space=vmem, size = 0x800, scoped, tag = 'input window, operand 1, single buffered']
    #allocation6 [shape = 's32[1]{0}', space=sflag, size = 0x4, scoped, tag = 'scoped memory for tpu_custom_call.1']
    #allocation7 [shape = 'u8[32768]{0}', space=vmem, size = 0x8000, scoped, tag = 'input window, operand 2, single buffered']
    #allocation8 [shape = 'u8[2048]{0}', space=vmem, size = 0x800, scoped, tag = 'output window, operand 0, single buffered']
    %8 = vsyncpa [#allocation3], 0
    %9 = vsyncpa [#allocation6], 0
    %10 = vsyncpa [#allocation4], 0
    // Predicated region
    $region2: #{tpu_custom_call.1} parent=1 // pred_check
      _
    $region3: #{tpu_custom_call.1} parent=1 // pred_check_branch
      %12 = sbr.rel (0) target = $region5
    $region4: #{tpu_custom_call.1} parent=1 // pred_region
      %s14 = ssub.s32 64, 64
      %15 = vsyncadd [#allocation3], %s14
      %s17 = sshll.u32 [#allocation2], 4
      %s18 = int_to_ptr.vmem [resolvable:$true] %s17
      %20 = dma.hbm_to_vmem [thread:$0]  %s0, 64, %s18, [#allocation3]
    $region5: #{tpu_custom_call.1} parent=1 // pred_fallthru
      _
    // Predicated region
    $region6: #{tpu_custom_call.1} parent=1 // pred_check
      _
    $region7: #{tpu_custom_call.1} parent=1 // pred_check_branch
      %22 = sbr.rel (0) target = $region9
    $region8: #{tpu_custom_call.1} parent=1 // pred_region
      %s24 = ssub.s32 64, 64
      %25 = vsyncadd [#allocation6], %s24
      %s27 = sshll.u32 [#allocation5], 4
      %s28 = int_to_ptr.vmem [resolvable:$true] %s27
      %30 = dma.hbm_to_vmem [thread:$0]  %s1, 64, %s28, [#allocation6]
    $region9: #{tpu_custom_call.1} parent=1 // pred_fallthru
      _
    // Predicated region
    $region10: #{tpu_custom_call.1} parent=1 // pred_check
      _
    $region11: #{tpu_custom_call.1} parent=1 // pred_check_branch
      %32 = sbr.rel (0) target = $region13
    $region12: #{tpu_custom_call.1} parent=1 // pred_region
      %s34 = ssub.s32 1024, 1024
      %35 = vsyncadd [#allocation6], %s34
      %s36 = sshll.u32 [#allocation7], 4
      %s37 = int_to_ptr.vmem [resolvable:$true] %s36
      %42 = dma.hbm_to_vmem [thread:$0]  %s2, 1024, %s37, [#allocation6], 64, 64, 4
    $region13: #{tpu_custom_call.1} parent=1 // pred_fallthru
      _
    // Predicated region
    $region14: #{tpu_custom_call.1} parent=1 // pred_check
      _
    $region15: #{tpu_custom_call.1} parent=1 // pred_check_branch
      %44 = sbr.rel (0) target = $region17
    $region16: #{tpu_custom_call.1} parent=1 // pred_region
      %45 = dma.done [#allocation3], 64
    $region17: #{tpu_custom_call.1} parent=1 // pred_fallthru
      _
    // Predicated region
    $region18: #{tpu_custom_call.1} parent=1 // pred_check
      _
    $region19: #{tpu_custom_call.1} parent=1 // pred_check_branch
      %47 = sbr.rel (0) target = $region21
    $region20: #{tpu_custom_call.1} parent=1 // pred_region
      %48 = dma.done [#allocation6], 64
    $region21: #{tpu_custom_call.1} parent=1 // pred_fallthru
      _
    // Predicated region
    $region22: #{tpu_custom_call.1} parent=1 // pred_check
      _
    $region23: #{tpu_custom_call.1} parent=1 // pred_check_branch
      %50 = sbr.rel (0) target = $region25
    $region24: #{tpu_custom_call.1} parent=1 // pred_region
      %51 = dma.done [#allocation6], 1024
    $region25: #{tpu_custom_call.1} parent=1 // pred_fallthru
      _
    %v53 = vld [vmem:[#allocation5] sm:$0xf]
    %vm54 = vcmask 1043456
    %v55 = vsel %vm54, %v53, 0.0
    %v56 = vrot.slane %v55, 4
    %v57 = vadd.f32 %v55, %v56
    %v58 = vrot.slane %v57, 2
    %v59 = vadd.f32 %v57, %v58
    %v60 = vrot.slane %v59, 1
    %v61 = vadd.f32 %v59, %v60
    %v62 = vld [vmem:[#allocation2] sm:$0xf]
    %v63 = vadd.f32 %v62, %v61
    %v64 = vmul.f32 %v63, 0.0625
    %v65 = vpack.c.bf16 %v64, %v64
    %v66 = vld [vmem:[#allocation7] sm:$0xf]
    %v67 = vld [vmem:[#allocation7 + $0x4] sm:$0xf]
    %v68 = vld [vmem:[#allocation7 + $0x8] sm:$0xf]
    %v69 = vld [vmem:[#allocation7 + $0xc] sm:$0xf]
    %v70 = vld [vmem:[#allocation7 + $0x10] sm:$0xf]
    %v71 = vld [vmem:[#allocation7 + $0x14] sm:$0xf]
    %v72 = vld [vmem:[#allocation7 + $0x18] sm:$0xf]
    %v73 = vld [vmem:[#allocation7 + $0x1c] sm:$0xf]
    %v74 = vld [vmem:[#allocation7 + $0x20] sm:$0xf]
    %v75 = vld [vmem:[#allocation7 + $0x24] sm:$0xf]
    %v76 = vld [vmem:[#allocation7 + $0x28] sm:$0xf]
    %v77 = vld [vmem:[#allocation7 + $0x2c] sm:$0xf]
    %v78 = vld [vmem:[#allocation7 + $0x30] sm:$0xf]
    %v79 = vld [vmem:[#allocation7 + $0x34] sm:$0xf]
    %v80 = vld [vmem:[#allocation7 + $0x38] sm:$0xf]
    %v81 = vld [vmem:[#allocation7 + $0x3c] sm:$0xf]
    %v98 = vunpack.c.l.b16 %v66
    %v99 = vunpack.c.l.b16 %v67
    %v100 = vunpack.c.l.b16 %v68
    %v101 = vunpack.c.l.b16 %v69
    %v102 = vunpack.c.l.b16 %v70
    %v103 = vunpack.c.l.b16 %v71
    %v104 = vunpack.c.l.b16 %v72
    %v105 = vunpack.c.l.b16 %v73
    %v106 = vunpack.c.l.b16 %v74
    %v107 = vunpack.c.l.b16 %v75
    %v108 = vunpack.c.l.b16 %v76
    %v109 = vunpack.c.l.b16 %v77
    %v110 = vunpack.c.l.b16 %v78
    %v111 = vunpack.c.l.b16 %v79
    %v112 = vunpack.c.l.b16 %v80
    %v113 = vunpack.c.l.b16 %v81
    %v114 = vpack.c.b16 %v99, %v98
    %v115 = vpack.c.b16 %v101, %v100
    %v116 = vpack.c.b16 %v103, %v102
    %v117 = vpack.c.b16 %v105, %v104
    %v118 = vpack.c.b16 %v107, %v106
    %v119 = vpack.c.b16 %v109, %v108
    %v120 = vpack.c.b16 %v111, %v110
    %v121 = vpack.c.b16 %v113, %v112
    %130 = vmatprep.subr.bf16.mxu0 0
    %131 = vmatpush1.bf16.msra.mxu0 %v114
    %132 = vmatprep.subr.bf16.mxu0 0
    %133 = vmatpush1.bf16.msra.mxu0 %v115
    %134 = vmatprep.subr.bf16.mxu0 0
    %135 = vmatpush1.bf16.msra.mxu0 %v116
    %136 = vmatprep.subr.bf16.mxu0 0
    %137 = vmatpush1.bf16.msra.mxu0 %v117
    %138 = vmatprep.subr.bf16.mxu0 0
    %139 = vmatpush1.bf16.msra.mxu0 %v118
    %140 = vmatprep.subr.bf16.mxu0 0
    %141 = vmatpush1.bf16.msra.mxu0 %v119
    %142 = vmatprep.subr.bf16.mxu0 0
    %143 = vmatpush1.bf16.msra.mxu0 %v120
    %144 = vmatprep.subr.bf16.mxu0 0
    %145 = vmatpush1.bf16.msra.mxu0 %v121
    %146 = vmatprep.subr.bf16.mxu0 0
    %147 = vmatpush1.bf16.msra.mxu0 0
    %148 = vmatprep.subr.bf16.mxu0 0
    %149 = vmatpush1.bf16.msra.mxu0 0
    %150 = vmatprep.subr.bf16.mxu0 0
    %151 = vmatpush1.bf16.msra.mxu0 0
    %152 = vmatprep.subr.bf16.mxu0 0
    %153 = vmatpush1.bf16.msra.mxu0 0
    %154 = vmatprep.subr.bf16.mxu0 0
    %155 = vmatpush1.bf16.msra.mxu0 0
    %156 = vmatprep.subr.bf16.mxu0 0
    %157 = vmatpush1.bf16.msra.mxu0 0
    %158 = vmatprep.subr.bf16.mxu0 0
    %159 = vmatpush1.bf16.msra.mxu0 0
    %160 = vmatprep.subr.bf16.mxu0 0
    %161 = vmatpush1.bf16.msra.mxu0 0
    %162 = vmatprep.mubr.bf16.mxu0 0
    %163 = vmatmul.mubr.bf16.gmra.mrb[0].mxu0 %v65
    %v164 = vpop.f32.mrb[0].mxu0
    %v165 = vadd.f32 0.0, %v164
    %v166 = vpop.f32.mrb[0].mxu0
    %v167 = vpop.f32.mrb[0].mxu0
    %v168 = vpop.f32.mrb[0].mxu0
    %169 = vdwg.mxu0
    %v170 = vmul.f32 %v165, %v165
    %v171 = vsel %vm54, %v170, 0.0
    %172 = vadd.xlane.f32.xlu0 %v171
    %v173 = vpop.xlane.xlu0 %172
    %v174 = vmax.f32 %v173, 1e-12
    %v175 = vrsqrt.pop %v174
    %v176 = vmul.f32 %v165, %v175
    %177 = vst [vmem:[#allocation8] sm:$0xf] %v176
    // Predicated region
    $region26: #{tpu_custom_call.1} parent=1 // pred_check
      _
    $region27: #{tpu_custom_call.1} parent=1 // pred_check_branch
      %179 = sbr.rel (0) target = $region29
    $region28: #{tpu_custom_call.1} parent=1 // pred_region
      %s181 = ssub.s32 64, 64
      %182 = vsyncadd [#allocation4], %s181
      %s184 = sshll.u32 [#allocation8], 4
      %s185 = int_to_ptr.vmem [resolvable:$true] %s184
      %187 = dma.vmem_to_hbm [thread:$0]  %s185, 64, %s3, [#allocation4]
    $region29: #{tpu_custom_call.1} parent=1 // pred_fallthru
      _
    // Predicated region
    $region30: #{tpu_custom_call.1} parent=1 // pred_check
      _
    $region31: #{tpu_custom_call.1} parent=1 // pred_check_branch
      %189 = sbr.rel (0) target = $region33
    $region32: #{tpu_custom_call.1} parent=1 // pred_region
      %190 = dma.done [#allocation4], 64
    $region33: #{tpu_custom_call.1} parent=1 // pred_fallthru
      _
    %191 = vsyncpa [#allocation3], 1
    %192 = vsyncpa [#allocation6], 1
    %193 = vsyncpa [#allocation4], 1

</llo_original>
